<compile_context>
chip_gen: v5e
topology: v5e:2x2
jax: 0.10.0
libtpu: 0.0.40
codegen_flags: <defaults>
</compile_context>

<pallas_src>
import functools

import jax
import jax.numpy as jnp
from jax.experimental import pallas as pl
from jax.experimental.pallas import tpu as pltpu


def _converter_kernel(num_layers, is_gate, compute_dtype, *refs):
    """Fused 1x1-conv MLP on a channel-major pixel tile.

    refs = (x_ref, W_0, b_0, ..., W_{L-1}, b_{L-1}, o_ref)
      x_ref : (C_in, TILE)       input tile, pixels on the lane dim
      W_l   : (C_out_l, C_in_l)  folded weight (BN + prev shift folded in)
      b_l   : (C_out_l, 1)       folded bias column (f32)
      o_ref : (C_out, TILE)      output tile (lane-dense stores)
    """
    x_ref = refs[0]
    o_ref = refs[-1]
    params = refs[1:-1]

    h = x_ref[...]                                   # (C_in, TILE)
    for l in range(num_layers):
        w = params[2 * l][...]                       # (C_out_l, C_in_l)
        b = params[2 * l + 1][...]                   # (C_out_l, 1), f32
        # One matmul per layer over the whole tile; f32 MXU accumulation.
        h = jnp.dot(w, h.astype(compute_dtype),
                    preferred_element_type=jnp.float32) + b
        if l < num_layers - 1:
            h = jnp.maximum(h, 0.0)                  # ReLU (BN folded fwd)
    if is_gate:
        h = jax.nn.sigmoid(h)                        # EUP, f32
    o_ref[...] = h.astype(o_ref.dtype)


def init_params(key, input_dim, hidden_dim, output_dim, num_layers, adj_channel):
    """Deterministic raw parameters mirroring the PyTorch module (eval mode)."""
    if num_layers <= 1:
        raise ValueError("num_layers must be greater than 1")
    hidden = []
    c_in = input_dim
    for _ in range(num_layers - 1):
        key, k_w, k_b, k_g, k_beta, k_rm, k_rv = jax.random.split(key, 7)
        w = jax.random.normal(k_w, (hidden_dim, c_in), jnp.float32) * 0.1   # (out, in)
        b = jax.random.normal(k_b, (hidden_dim,), jnp.float32) * 0.05
        gamma = 1.0 + 0.1 * jax.random.normal(k_g, (hidden_dim,), jnp.float32)
        beta = 0.1 * jax.random.normal(k_beta, (hidden_dim,), jnp.float32)
        run_mean = 0.1 * jax.random.normal(k_rm, (hidden_dim,), jnp.float32)
        run_var = 1.0 + 0.1 * jax.random.uniform(k_rv, (hidden_dim,), jnp.float32)
        hidden.append((w, b, gamma, beta, run_mean, run_var))
        c_in = hidden_dim
    key, k_w, k_b = jax.random.split(key, 3)
    c_out = output_dim * adj_channel
    w_f = jax.random.normal(k_w, (c_out, hidden_dim), jnp.float32) * 0.1
    b_f = jax.random.normal(k_b, (c_out,), jnp.float32) * 0.05
    return {"hidden": hidden, "final": (w_f, b_f)}


def fold_params(params, eps=1e-5):
    """Fold eval-mode BN and biases into the *next* layer's matmul (exact).

    (relu(z)*scale + shift) @ W_next + b_next
        == relu(z) @ (W_next * scale) + (W_next @ shift + b_next)
    Returns [(W_l, b_l)]; W_l: (C_out_l, C_in_l), b_l: (C_out_l, 1).  A ReLU
    sits between consecutive layers; the last layer has none.
    """
    folded = []
    pend_scale = None
    pend_shift = None
    for (w, b, gamma, beta, run_mean, run_var) in params["hidden"]:
        if pend_scale is not None:
            b = b + w @ pend_shift
            w = w * pend_scale[None, :]
        folded.append((w, b.reshape(-1, 1)))
        scale = gamma / jnp.sqrt(run_var + eps)
        shift = beta - run_mean * scale
        pend_scale, pend_shift = scale, shift
    w_f, b_f = params["final"]
    b_f = b_f + w_f @ pend_shift
    w_f = w_f * pend_scale[None, :]
    folded.append((w_f, b_f.reshape(-1, 1)))
    return folded


def _round_up(x, m):
    return ((x + m - 1) // m) * m


def _vmem_budget_bytes():
    """Generation-aware (tile-sizing budget, scoped vmem_limit_bytes)."""
    try:
        phys = int(pltpu.get_tpu_info().vmem_capacity_bytes)
    except Exception:
        phys = 64 * 1024 * 1024          # conservative (v7x-sized) fallback
    if phys >= 128 * 1024 * 1024:        # v5e / v6e: 128 MiB physical VMEM
        return 64 * 1024 * 1024, 96 * 1024 * 1024
    return 24 * 1024 * 1024, 32 * 1024 * 1024   # v7x: 64 MiB physical VMEM


def _choose_pixel_tile(total_pixels, per_pixel_bytes, vmem_budget_bytes,
                       min_steps=4):
    """Largest lane-aligned pixel tile fitting the VMEM budget, while keeping
    at least `min_steps` grid steps so the software pipeline can overlap DMA
    with compute (and both v7x TensorCores get >= 2 steps each)."""
    cap = max(128, (vmem_budget_bytes // max(per_pixel_bytes, 1)) // 128 * 128)
    want = _round_up(max(1, -(-total_pixels // min_steps)), 128)
    tile = max(128, min(cap, want))
    tile = min(tile, _round_up(total_pixels, 128))
    return tile


def population_converter_forward(x, params, adj_channel, is_gate,
                                 compute_dtype=None, min_grid_steps=4):
    """x: (b, s, input_dim, n, n) -> (b, s, output_dim*adj_channel, n, n)."""
    b, s, c_in, n, n2 = x.shape
    assert n == n2, "adjacency input must be square"

    folded = fold_params(params)
    num_layers = len(folded)
    c_hidden = max(w.shape[0] for w, _ in folded)
    c_out = folded[-1][0].shape[0]
    assert c_out % adj_channel == 0

    if compute_dtype is None:
        compute_dtype = x.dtype
    compute_dtype = jnp.dtype(compute_dtype)

    B = b * s
    P = n * n
    total_px = B * P

    # Channel-major, fully pixel-flattened layout: (C_in, B*P).  One cheap XLA
    # transpose in the wrapper; buys sublane/lane-dense blocks and exactly one
    # MXU dot per layer per grid step in the kernel.
    x_cm = jnp.transpose(x.reshape(B, c_in, P), (1, 0, 2)).reshape(c_in, total_px)
    x_cm = x_cm.astype(compute_dtype)

    budget, vmem_limit = _vmem_budget_bytes()
    in_b = compute_dtype.itemsize
    out_b = jnp.dtype(x.dtype).itemsize
    # Double-buffered input + output streams plus live f32 intermediates.
    per_px = (2 * c_in * in_b + 2 * c_out * out_b
              + 2 * max(c_hidden, c_out) * 4)
    tile = _choose_pixel_tile(total_px, per_px, budget, min_grid_steps)

    # Pad awkward pixel counts up to a tile multiple instead of shrinking tile.
    padded_px = _round_up(total_px, tile)
    if padded_px != total_px:
        x_cm = jnp.pad(x_cm, ((0, 0), (0, padded_px - total_px)))
    grid = (padded_px // tile,)

    flat_params = []
    in_specs = [pl.BlockSpec((c_in, tile), lambda i: (0, i))]
    for (w, bias) in folded:
        flat_params.append(w.astype(compute_dtype))
        in_specs.append(pl.BlockSpec(w.shape, lambda i: (0, 0)))
        flat_params.append(bias.astype(jnp.float32))   # keep biases in f32
        in_specs.append(pl.BlockSpec(bias.shape, lambda i: (0, 0)))

    kernel = functools.partial(_converter_kernel, num_layers, is_gate,
                               compute_dtype)

    out_cm = pl.pallas_call(
        kernel,
        out_shape=jax.ShapeDtypeStruct((c_out, padded_px), x.dtype),
        grid_spec=pltpu.PrefetchScalarGridSpec(
            num_scalar_prefetch=0,
            grid=grid,
            in_specs=in_specs,
            out_specs=pl.BlockSpec((c_out, tile), lambda i: (0, i)),
        ),
        compiler_params=pltpu.CompilerParams(
            dimension_semantics=("parallel",),
            vmem_limit_bytes=vmem_limit,
        ),
    )(x_cm, *flat_params)

    out_cm = out_cm[:, :total_px]
    out = jnp.transpose(out_cm.reshape(c_out, B, P), (1, 0, 2))
    return out.reshape(b, s, c_out, n, n)


def _reference_forward(x, params, is_gate, eps=1e-5):
    """Pure-JAX reference of the *un-folded* eval-mode module (no Pallas)."""
    b, s, c_in, n, _ = x.shape
    h = x.reshape(b * s, c_in, n * n).astype(jnp.float32)
    hi = jax.lax.Precision.HIGHEST
    for (w, bias, gamma, beta, run_mean, run_var) in params["hidden"]:
        h = jnp.einsum("oc,bcp->bop", w, h, precision=hi) + bias[None, :, None]
        h = jnp.maximum(h, 0.0)
        scale = gamma / jnp.sqrt(run_var + eps)
        shift = beta - run_mean * scale
        h = h * scale[None, :, None] + shift[None, :, None]
    w_f, b_f = params["final"]
    y = jnp.einsum("oc,bcp->bop", w_f, h, precision=hi) + b_f[None, :, None]
    if is_gate:
        y = jax.nn.sigmoid(y)
    c_out = w_f.shape[0]
    return y.reshape(b, s, c_out, n, n)


if __name__ == "__main__":
    # Small shapes consistent with the module's forward signature.
    batch, seq, input_dim, node_cnt = 2, 8, 4, 16
    hidden_dim, output_dim, num_layers, adj_channel, is_gate = 32, 1, 3, 2, True

    key = jax.random.PRNGKey(0)
    key, k_x = jax.random.split(key)
    x = jax.random.normal(
        k_x, (batch, seq, input_dim, node_cnt, node_cnt), jnp.float32)

    params = init_params(key, input_dim, hidden_dim, output_dim,
                         num_layers, adj_channel)

    out = population_converter_forward(x, params, adj_channel, is_gate)
    out = jax.block_until_ready(out)

    expected_shape = (batch, seq, output_dim * adj_channel, node_cnt, node_cnt)
    assert out.shape == expected_shape, (out.shape, expected_shape)

    ref = jax.block_until_ready(_reference_forward(x, params, is_gate))
    max_err = float(jnp.max(jnp.abs(out - ref)))
    assert jnp.allclose(out, ref, atol=5e-5, rtol=2e-4), f"mismatch, max_err={max_err}"

    print("KERNEL_OK")
</pallas_src>

<mosaic_0001>
module attributes {stable_mosaic.version = 11 : i64} {
  func.func @_converter_kernel(%arg0: i32, %arg1: memref<4x1024xf32, #tpu.memory_space<vmem>>, %arg2: memref<32x4xf32, #tpu.memory_space<vmem>>, %arg3: memref<32x1xf32, #tpu.memory_space<vmem>>, %arg4: memref<32x32xf32, #tpu.memory_space<vmem>>, %arg5: memref<32x1xf32, #tpu.memory_space<vmem>>, %arg6: memref<2x32xf32, #tpu.memory_space<vmem>>, %arg7: memref<2x1xf32, #tpu.memory_space<vmem>>, %arg8: memref<2x1024xf32, #tpu.memory_space<vmem>>) attributes {dimension_semantics = [#tpu.dimension_semantics<parallel>], iteration_bounds = array<i64: 4>, scalar_prefetch = 0 : i64, scratch_operands = 0 : i64, tpu.core_type = #tpu.core_type<tc>, window_params = [{transform_indices = @transform_0, window_bounds = array<i64: 4, 1024>}, {pipeline_mode = #tpu.pipeline_mode<synchronous>, transform_indices = @transform_1, window_bounds = array<i64: 32, 4>}, {pipeline_mode = #tpu.pipeline_mode<synchronous>, transform_indices = @transform_2, window_bounds = array<i64: 32, 1>}, {pipeline_mode = #tpu.pipeline_mode<synchronous>, transform_indices = @transform_3, window_bounds = array<i64: 32, 32>}, {pipeline_mode = #tpu.pipeline_mode<synchronous>, transform_indices = @transform_4, window_bounds = array<i64: 32, 1>}, {pipeline_mode = #tpu.pipeline_mode<synchronous>, transform_indices = @transform_5, window_bounds = array<i64: 2, 32>}, {pipeline_mode = #tpu.pipeline_mode<synchronous>, transform_indices = @transform_6, window_bounds = array<i64: 2, 1>}, {transform_indices = @transform_7, window_bounds = array<i64: 2, 1024>}]} {
    %c0 = arith.constant 0 : index
    %c0_0 = arith.constant 0 : index
    %0 = vector.load %arg1[%c0, %c0_0] : memref<4x1024xf32, #tpu.memory_space<vmem>>, vector<4x1024xf32>
    %c0_1 = arith.constant 0 : index
    %c0_2 = arith.constant 0 : index
    %1 = vector.load %arg2[%c0_1, %c0_2] : memref<32x4xf32, #tpu.memory_space<vmem>>, vector<32x4xf32>
    %c0_3 = arith.constant 0 : index
    %c0_4 = arith.constant 0 : index
    %2 = vector.load %arg3[%c0_3, %c0_4] : memref<32x1xf32, #tpu.memory_space<vmem>>, vector<32x1xf32>
    %cst = arith.constant dense<0.000000e+00> : vector<32x1024xf32>
    %3 = tpu.matmul %1, %0, %cst {dimension_numbers = #tpu.dot_dimension_numbers<[1], [0], [0], [1], [0, 0, 1, 1], [], []>} : vector<32x4xf32>, vector<4x1024xf32>, vector<32x1024xf32> -> vector<32x1024xf32>
    %4 = vector.broadcast %2 : vector<32x1xf32> to vector<32x1024xf32>
    %5 = arith.addf %3, %4 : vector<32x1024xf32>
    %cst_5 = arith.constant 0.000000e+00 : f32
    %6 = vector.broadcast %cst_5 : f32 to vector<32x1024xf32>
    %7 = arith.maximumf %5, %6 : vector<32x1024xf32>
    %c0_6 = arith.constant 0 : index
    %c0_7 = arith.constant 0 : index
    %8 = vector.load %arg4[%c0_6, %c0_7] : memref<32x32xf32, #tpu.memory_space<vmem>>, vector<32x32xf32>
    %c0_8 = arith.constant 0 : index
    %c0_9 = arith.constant 0 : index
    %9 = vector.load %arg5[%c0_8, %c0_9] : memref<32x1xf32, #tpu.memory_space<vmem>>, vector<32x1xf32>
    %cst_10 = arith.constant dense<0.000000e+00> : vector<32x1024xf32>
    %10 = tpu.matmul %8, %7, %cst_10 {dimension_numbers = #tpu.dot_dimension_numbers<[1], [0], [0], [1], [0, 0, 1, 1], [], []>} : vector<32x32xf32>, vector<32x1024xf32>, vector<32x1024xf32> -> vector<32x1024xf32>
    %11 = vector.broadcast %9 : vector<32x1xf32> to vector<32x1024xf32>
    %12 = arith.addf %10, %11 : vector<32x1024xf32>
    %cst_11 = arith.constant 0.000000e+00 : f32
    %13 = vector.broadcast %cst_11 : f32 to vector<32x1024xf32>
    %14 = arith.maximumf %12, %13 : vector<32x1024xf32>
    %c0_12 = arith.constant 0 : index
    %c0_13 = arith.constant 0 : index
    %15 = vector.load %arg6[%c0_12, %c0_13] : memref<2x32xf32, #tpu.memory_space<vmem>>, vector<2x32xf32>
    %c0_14 = arith.constant 0 : index
    %c0_15 = arith.constant 0 : index
    %16 = vector.load %arg7[%c0_14, %c0_15] : memref<2x1xf32, #tpu.memory_space<vmem>>, vector<2x1xf32>
    %cst_16 = arith.constant dense<0.000000e+00> : vector<2x1024xf32>
    %17 = tpu.matmul %15, %14, %cst_16 {dimension_numbers = #tpu.dot_dimension_numbers<[1], [0], [0], [1], [0, 0, 1, 1], [], []>} : vector<2x32xf32>, vector<32x1024xf32>, vector<2x1024xf32> -> vector<2x1024xf32>
    %18 = vector.broadcast %16 : vector<2x1xf32> to vector<2x1024xf32>
    %19 = arith.addf %17, %18 : vector<2x1024xf32>
    %20 = arith.negf %19 : vector<2x1024xf32>
    %21 = math.exp %20 : vector<2x1024xf32>
    %cst_17 = arith.constant 1.000000e+00 : f32
    %22 = vector.broadcast %cst_17 : f32 to vector<2x1024xf32>
    %23 = arith.addf %22, %21 : vector<2x1024xf32>
    %24 = arith.divf %22, %23 : vector<2x1024xf32>
    %c0_18 = arith.constant 0 : index
    %c0_19 = arith.constant 0 : index
    %25 = vector.load %arg8[%c0_18, %c0_19] : memref<2x1024xf32, #tpu.memory_space<vmem>>, vector<2x1024xf32>
    tpu.vector_store %arg8[%c0_18, %c0_19], %24 {strides = array<i32>} : memref<2x1024xf32, #tpu.memory_space<vmem>>, vector<2x1024xf32>,
    return
  }
  func.func @transform_0(%arg0: i32) -> (i32, i32) {
    %c0_i32 = arith.constant 0 : i32
    %c0_i32_0 = arith.constant 0 : i32
    return %c0_i32, %arg0 : i32, i32
  }
  func.func @transform_1(%arg0: i32) -> (i32, i32) {
    %c0_i32 = arith.constant 0 : i32
    %c0_i32_0 = arith.constant 0 : i32
    %c0_i32_1 = arith.constant 0 : i32
    return %c0_i32, %c0_i32_0 : i32, i32
  }
  func.func @transform_2(%arg0: i32) -> (i32, i32) {
    %c0_i32 = arith.constant 0 : i32
    %c0_i32_0 = arith.constant 0 : i32
    %c0_i32_1 = arith.constant 0 : i32
    return %c0_i32, %c0_i32_0 : i32, i32
  }
  func.func @transform_3(%arg0: i32) -> (i32, i32) {
    %c0_i32 = arith.constant 0 : i32
    %c0_i32_0 = arith.constant 0 : i32
    %c0_i32_1 = arith.constant 0 : i32
    return %c0_i32, %c0_i32_0 : i32, i32
  }
  func.func @transform_4(%arg0: i32) -> (i32, i32) {
    %c0_i32 = arith.constant 0 : i32
    %c0_i32_0 = arith.constant 0 : i32
    %c0_i32_1 = arith.constant 0 : i32
    return %c0_i32, %c0_i32_0 : i32, i32
  }
  func.func @transform_5(%arg0: i32) -> (i32, i32) {
    %c0_i32 = arith.constant 0 : i32
    %c0_i32_0 = arith.constant 0 : i32
    %c0_i32_1 = arith.constant 0 : i32
    return %c0_i32, %c0_i32_0 : i32, i32
  }
  func.func @transform_6(%arg0: i32) -> (i32, i32) {
    %c0_i32 = arith.constant 0 : i32
    %c0_i32_0 = arith.constant 0 : i32
    %c0_i32_1 = arith.constant 0 : i32
    return %c0_i32, %c0_i32_0 : i32, i32
  }
  func.func @transform_7(%arg0: i32) -> (i32, i32) {
    %c0_i32 = arith.constant 0 : i32
    %c0_i32_0 = arith.constant 0 : i32
    return %c0_i32, %arg0 : i32, i32
  }
}

</mosaic_0001>

<llo_original>
// kernel: tpu_custom_call.1
$region0: #{tpu_custom_call.1}
  #allocation0 [shape = 'u32[]', space=smem, size = 0x4, offset = 0x4, fixed_abs, tag = 'smem constant byte address 0x4 - core index']
  #allocation1 [shape = 'u32[72,128]{1,0:T(1,128)}', space=vmem, size = 0x9000, scoped, tag = 'internal scratch']
  %s0 = inlined_call_operand.hbm [shape: f32[4,4096], index: 0, kind: input, shape index: {}]
  %s1 = inlined_call_operand.vmem [shape: f32[32,4], index: 1, kind: input, shape index: {}]
  %s2 = inlined_call_operand.vmem [shape: f32[32,1], index: 2, kind: input, shape index: {}]
  %s3 = inlined_call_operand.vmem [shape: f32[32,32], index: 3, kind: input, shape index: {}]
  %s4 = inlined_call_operand.vmem [shape: f32[32,1], index: 4, kind: input, shape index: {}]
  %s5 = inlined_call_operand.vmem [shape: f32[2,32], index: 5, kind: input, shape index: {}]
  %s6 = inlined_call_operand.vmem [shape: f32[2,1], index: 6, kind: input, shape index: {}]
  %s7 = inlined_call_operand.hbm [shape: f32[2,4096], index: 7, kind: output, shape index: {}]
  %s8 = sld [smem:[#allocation0]]
  $region65: #{tpu_custom_call.1} parent=0
    _
  %s10 = ssub.s32 1, %s8
  %s11 = scalar_select 0, %s10, %s8
  $region1: #{tpu_custom_call.1} parent=0
    #allocation2 [shape = 'u8[32768]{0}', space=vmem, size = 0x8000, scoped, tag = 'input window, operand 0']
    #allocation3 [shape = 's32[2]{0}', space=sflag, size = 0x8, scoped, tag = 'scoped memory for tpu_custom_call.1']
    #allocation4 [shape = 's32[2]{0}', space=sflag, size = 0x8, scoped, tag = 'scoped memory for tpu_custom_call.1']
    #allocation5 [shape = 'u8[16384]{0}', space=vmem, size = 0x4000, scoped, tag = 'output window, operand 0']
    %12 = vsyncpa [#allocation3], 0
    %s13 = scalar_lea.sflag [#allocation3], 1
    %14 = vsyncpa %s13, 0
    %15 = vsyncpa [#allocation4], 0
    %s16 = scalar_lea.sflag [#allocation4], 1
    %17 = vsyncpa %s16, 0
    loop: start=0, step=1, limit=6
    $region2: #{tpu_custom_call.1} parent=1 // loop_pre_header
      _
    $region3: #{tpu_custom_call.1} parent=1 // loop_header
      %s19 = sphi 0, %s23
      %p20 = scmp.ge.s32.totalorder %s19, 6
      %s29 = sphi 0, %s31
      %s32 = sphi 0, %s29
      %s33 = sphi 0, %s32
      %s49 = sphi 0, %s33
      %s53 = sphi 0, %s53
      %s55 = sphi 0, %s53
      %s56 = sphi 0, %s55
      %s70 = sphi 0, %s56
      %s74 = sphi 0, %s74
      %s76 = sphi 0, %s74
      %s77 = sphi 0, %s76
      %s91 = sphi 0, %s77
      %s95 = sphi 0, %s95
      %s97 = sphi 0, %s95
      %s98 = sphi 0, %s97
      %s112 = sphi 0, %s98
      %s116 = sphi 0, %s116
      %s118 = sphi 0, %s116
      %s119 = sphi 0, %s118
      %s133 = sphi 0, %s119
      %s137 = sphi 0, %s137
      %s139 = sphi 0, %s137
      %s140 = sphi 0, %s139
      %s154 = sphi 0, %s140
      %s158 = sphi 0, %s158
      %s160 = sphi 0, %s158
      %s161 = sphi 0, %s160
      %s175 = sphi 0, %s161
      %s181 = sphi 0, %s183
      %s184 = sphi 0, %s181
      %s185 = sphi 0, %s184
      %s201 = sphi 0, %s185
    $region4: #{tpu_custom_call.1} parent=1 // loop_header_branch
      %22 = sbr.rel (%p20) target = $region8
    $region5: #{tpu_custom_call.1} parent=1 // loop_body
      %s24 = ssub.s32 %s19, 1
      %s25 = ssub.s32 %s19, 2
      %s26 = sadd.s32 %s19, 1
      %s27 = ssub.s32 %s19, %s26
      %p28 = scmp.eq.s32.totalorder %s27, 0
      %s30 = sadd.s32 %s29, 1
      %s31 = scalar_select %p28, %s29, %s30
      %p34 = pneg %p28
      %p35 = scmp.eq.s32.totalorder %s19, 3
      %p36 = por %p34, %p35
      %p37 = scmp.ne.s32.totalorder %s29, %s32
      %p38 = scmp.eq.s32.totalorder %s19, 0
      %p39 = por %p37, %p38
      %p40 = scmp.ne.s32.totalorder %s29, %s32
      %p41 = scmp.eq.s32.totalorder %s24, 3
      %p42 = por %p40, %p41
      %p43 = scmp.ne.s32.totalorder %s32, %s33
      %p44 = scmp.eq.s32.totalorder %s24, 0
      %p45 = por %p43, %p44
      %p46 = scmp.ne.s32.totalorder %s32, %s33
      %p47 = scmp.eq.s32.totalorder %s25, 3
      %p48 = por %p46, %p47
      %p50 = scmp.ne.s32.totalorder %s33, %s49
      %p51 = scmp.eq.s32.totalorder %s25, 0
      %p52 = por %p50, %p51
      %s54 = sadd.s32 %s53, 1
      %p57 = scmp.eq.s32.totalorder %s19, 3
      %p58 = scmp.ne.s32.totalorder %s53, %s55
      %p59 = scmp.eq.s32.totalorder %s19, 0
      %p60 = por %p58, %p59
      %p61 = scmp.ne.s32.totalorder %s53, %s55
      %p62 = scmp.eq.s32.totalorder %s24, 3
      %p63 = por %p61, %p62
      %p64 = scmp.ne.s32.totalorder %s55, %s56
      %p65 = scmp.eq.s32.totalorder %s24, 0
      %p66 = por %p64, %p65
      %p67 = scmp.ne.s32.totalorder %s55, %s56
      %p68 = scmp.eq.s32.totalorder %s25, 3
      %p69 = por %p67, %p68
      %p71 = scmp.ne.s32.totalorder %s56, %s70
      %p72 = scmp.eq.s32.totalorder %s25, 0
      %p73 = por %p71, %p72
      %s75 = sadd.s32 %s74, 1
      %p78 = scmp.eq.s32.totalorder %s19, 3
      %p79 = scmp.ne.s32.totalorder %s74, %s76
      %p80 = scmp.eq.s32.totalorder %s19, 0
      %p81 = por %p79, %p80
      %p82 = scmp.ne.s32.totalorder %s74, %s76
      %p83 = scmp.eq.s32.totalorder %s24, 3
      %p84 = por %p82, %p83
      %p85 = scmp.ne.s32.totalorder %s76, %s77
      %p86 = scmp.eq.s32.totalorder %s24, 0
      %p87 = por %p85, %p86
      %p88 = scmp.ne.s32.totalorder %s76, %s77
      %p89 = scmp.eq.s32.totalorder %s25, 3
      %p90 = por %p88, %p89
      %p92 = scmp.ne.s32.totalorder %s77, %s91
      %p93 = scmp.eq.s32.totalorder %s25, 0
      %p94 = por %p92, %p93
      %s96 = sadd.s32 %s95, 1
      %p99 = scmp.eq.s32.totalorder %s19, 3
      %p100 = scmp.ne.s32.totalorder %s95, %s97
      %p101 = scmp.eq.s32.totalorder %s19, 0
      %p102 = por %p100, %p101
      %p103 = scmp.ne.s32.totalorder %s95, %s97
      %p104 = scmp.eq.s32.totalorder %s24, 3
      %p105 = por %p103, %p104
      %p106 = scmp.ne.s32.totalorder %s97, %s98
      %p107 = scmp.eq.s32.totalorder %s24, 0
      %p108 = por %p106, %p107
      %p109 = scmp.ne.s32.totalorder %s97, %s98
      %p110 = scmp.eq.s32.totalorder %s25, 3
      %p111 = por %p109, %p110
      %p113 = scmp.ne.s32.totalorder %s98, %s112
      %p114 = scmp.eq.s32.totalorder %s25, 0
      %p115 = por %p113, %p114
      %s117 = sadd.s32 %s116, 1
      %p120 = scmp.eq.s32.totalorder %s19, 3
      %p121 = scmp.ne.s32.totalorder %s116, %s118
      %p122 = scmp.eq.s32.totalorder %s19, 0
      %p123 = por %p121, %p122
      %p124 = scmp.ne.s32.totalorder %s116, %s118
      %p125 = scmp.eq.s32.totalorder %s24, 3
      %p126 = por %p124, %p125
      %p127 = scmp.ne.s32.totalorder %s118, %s119
      %p128 = scmp.eq.s32.totalorder %s24, 0
      %p129 = por %p127, %p128
      %p130 = scmp.ne.s32.totalorder %s118, %s119
      %p131 = scmp.eq.s32.totalorder %s25, 3
      %p132 = por %p130, %p131
      %p134 = scmp.ne.s32.totalorder %s119, %s133
      %p135 = scmp.eq.s32.totalorder %s25, 0
      %p136 = por %p134, %p135
      %s138 = sadd.s32 %s137, 1
      %p141 = scmp.eq.s32.totalorder %s19, 3
      %p142 = scmp.ne.s32.totalorder %s137, %s139
      %p143 = scmp.eq.s32.totalorder %s19, 0
      %p144 = por %p142, %p143
      %p145 = scmp.ne.s32.totalorder %s137, %s139
      %p146 = scmp.eq.s32.totalorder %s24, 3
      %p147 = por %p145, %p146
      %p148 = scmp.ne.s32.totalorder %s139, %s140
      %p149 = scmp.eq.s32.totalorder %s24, 0
      %p150 = por %p148, %p149
      %p151 = scmp.ne.s32.totalorder %s139, %s140
      %p152 = scmp.eq.s32.totalorder %s25, 3
      %p153 = por %p151, %p152
      %p155 = scmp.ne.s32.totalorder %s140, %s154
      %p156 = scmp.eq.s32.totalorder %s25, 0
      %p157 = por %p155, %p156
      %s159 = sadd.s32 %s158, 1
      %p162 = scmp.eq.s32.totalorder %s19, 3
      %p163 = scmp.ne.s32.totalorder %s158, %s160
      %p164 = scmp.eq.s32.totalorder %s19, 0
      %p165 = por %p163, %p164
      %p166 = scmp.ne.s32.totalorder %s158, %s160
      %p167 = scmp.eq.s32.totalorder %s24, 3
      %p168 = por %p166, %p167
      %p169 = scmp.ne.s32.totalorder %s160, %s161
      %p170 = scmp.eq.s32.totalorder %s24, 0
      %p171 = por %p169, %p170
      %p172 = scmp.ne.s32.totalorder %s160, %s161
      %p173 = scmp.eq.s32.totalorder %s25, 3
      %p174 = por %p172, %p173
      %p176 = scmp.ne.s32.totalorder %s161, %s175
      %p177 = scmp.eq.s32.totalorder %s25, 0
      %p178 = por %p176, %p177
      %s179 = ssub.s32 %s19, %s26
      %p180 = scmp.eq.s32.totalorder %s179, 0
      %s182 = sadd.s32 %s181, 1
      %s183 = scalar_select %p180, %s181, %s182
      %p186 = pneg %p180
      %p187 = scmp.eq.s32.totalorder %s19, 3
      %p188 = por %p186, %p187
      %p189 = scmp.ne.s32.totalorder %s181, %s184
      %p190 = scmp.eq.s32.totalorder %s19, 0
      %p191 = por %p189, %p190
      %p192 = scmp.ne.s32.totalorder %s181, %s184
      %p193 = scmp.eq.s32.totalorder %s24, 3
      %p194 = por %p192, %p193
      %p195 = scmp.ne.s32.totalorder %s184, %s185
      %p196 = scmp.eq.s32.totalorder %s24, 0
      %p197 = por %p195, %p196
      %p198 = scmp.ne.s32.totalorder %s184, %s185
      %p199 = scmp.eq.s32.totalorder %s25, 3
      %p200 = por %p198, %p199
      %p202 = scmp.ne.s32.totalorder %s185, %s201
      %p203 = scmp.eq.s32.totalorder %s25, 0
      %p204 = por %p202, %p203
      %p205 = scmp.le.s32.totalorder 1, %s19
      %p206 = scmp.lt.s32.totalorder %s19, 5
      %p207 = pnand %p205, %p206
      %p208 = pneg %p207
      // Predicated region
      $region9: #{tpu_custom_call.1} parent=5 // pred_check
        _
      $region10: #{tpu_custom_call.1} parent=5 // pred_check_branch
        %210 = sbr.rel (%p207) target = $region12
      $region11: #{tpu_custom_call.1} parent=5 // pred_region
        %s211 = ssub.s32 %s19, 1
        // Predicated region
        $region13: #{tpu_custom_call.1} parent=11 // pred_check
          %p212 = pneg %p66
        $region14: #{tpu_custom_call.1} parent=11 // pred_check_branch
          %214 = sbr.rel (%p212) target = $region16
        $region15: #{tpu_custom_call.1} parent=11 // pred_region
          _
        $region16: #{tpu_custom_call.1} parent=11 // pred_fallthru
          _
        // Predicated region
        $region17: #{tpu_custom_call.1} parent=11 // pred_check
          %p215 = pneg %p87
        $region18: #{tpu_custom_call.1} parent=11 // pred_check_branch
          %217 = sbr.rel (%p215) target = $region20
        $region19: #{tpu_custom_call.1} parent=11 // pred_region
          _
        $region20: #{tpu_custom_call.1} parent=11 // pred_fallthru
          _
        // Predicated region
        $region21: #{tpu_custom_call.1} parent=11 // pred_check
          %p218 = pneg %p108
        $region22: #{tpu_custom_call.1} parent=11 // pred_check_branch
          %220 = sbr.rel (%p218) target = $region24
        $region23: #{tpu_custom_call.1} parent=11 // pred_region
          _
        $region24: #{tpu_custom_call.1} parent=11 // pred_fallthru
          _
        // Predicated region
        $region25: #{tpu_custom_call.1} parent=11 // pred_check
          %p221 = pneg %p129
        $region26: #{tpu_custom_call.1} parent=11 // pred_check_branch
          %223 = sbr.rel (%p221) target = $region28
        $region27: #{tpu_custom_call.1} parent=11 // pred_region
          _
        $region28: #{tpu_custom_call.1} parent=11 // pred_fallthru
          _
        // Predicated region
        $region29: #{tpu_custom_call.1} parent=11 // pred_check
          %p224 = pneg %p150
        $region30: #{tpu_custom_call.1} parent=11 // pred_check_branch
          %226 = sbr.rel (%p224) target = $region32
        $region31: #{tpu_custom_call.1} parent=11 // pred_region
          _
        $region32: #{tpu_custom_call.1} parent=11 // pred_fallthru
          _
        // Predicated region
        $region33: #{tpu_custom_call.1} parent=11 // pred_check
          %p227 = pneg %p171
        $region34: #{tpu_custom_call.1} parent=11 // pred_check_branch
          %229 = sbr.rel (%p227) target = $region36
        $region35: #{tpu_custom_call.1} parent=11 // pred_region
          _
        $region36: #{tpu_custom_call.1} parent=11 // pred_fallthru
          _
      $region12: #{tpu_custom_call.1} parent=5 // pred_fallthru
        _
      %p230 = scmp.lt.s32.totalorder %s19, 4
      // Predicated region
      $region37: #{tpu_custom_call.1} parent=5 // pred_check
        %p231 = pneg %p230
      $region38: #{tpu_custom_call.1} parent=5 // pred_check_branch
        %233 = sbr.rel (%p231) target = $region40
      $region39: #{tpu_custom_call.1} parent=5 // pred_region
        // Predicated region
        $region41: #{tpu_custom_call.1} parent=39 // pred_check
          %p234 = pneg %p39
        $region42: #{tpu_custom_call.1} parent=39 // pred_check_branch
          %236 = sbr.rel (%p234) target = $region44
        $region43: #{tpu_custom_call.1} parent=39 // pred_region
          %s237 = sand.u32 %s29, 1
          %s238 = scalar_lea.sflag [#allocation3], %s237
          %s239 = sand.u32 %s29, 1
          %s240 = smul.addr %s239, 32
          %s241 = scalar_lea.vmem [#allocation2], %s240
          %s242 = smul.u32 8, %s19
          %244 = vsyncadd %s238, 0
          %s245 = smul.addr %s242, 4
          %s246 = scalar_lea.hbm %s0, %s245
          %s248 = sshll.u32 %s246, 4
          %s249 = int_to_ptr.hbm [resolvable:$true] %s248
          %s250 = sshll.u32 %s241, 4
          %s251 = int_to_ptr.vmem [resolvable:$true] %s250
          %253 = dma.hbm_to_vmem [thread:$0]  %s249, 512, %s251, %s238
        $region44: #{tpu_custom_call.1} parent=39 // pred_fallthru
          _
      $region40: #{tpu_custom_call.1} parent=5 // pred_fallthru
        _
      %p254 = scmp.le.s32.totalorder 1, %s19
      %p255 = scmp.lt.s32.totalorder %s19, 5
      %p256 = pnand %p254, %p255
      %p257 = pneg %p256
      // Predicated region
      $region45: #{tpu_custom_call.1} parent=5 // pred_check
        _
      $region46: #{tpu_custom_call.1} parent=5 // pred_check_branch
        %259 = sbr.rel (%p256) target = $region48
      $region47: #{tpu_custom_call.1} parent=5 // pred_region
        %s260 = ssub.s32 %s19, 1
        %s261 = sand.u32 %s32, 1
        %s262 = scalar_lea.sflag [#allocation3], %s261
        %s263 = sand.u32 %s32, 1
        %s264 = smul.addr %s263, 32
        %s265 = scalar_lea.vmem [#allocation2], %s264
        // Predicated region
        $region49: #{tpu_custom_call.1} parent=47 // pred_check
          %p266 = pneg %p45
        $region50: #{tpu_custom_call.1} parent=47 // pred_check_branch
          %268 = sbr.rel (%p266) target = $region52
        $region51: #{tpu_custom_call.1} parent=47 // pred_region
          %270 = dma.done %s262, 512
        $region52: #{tpu_custom_call.1} parent=47 // pred_fallthru
          _
        %s271 = sand.u32 %s32, 1
        %s272 = scalar_lea.sflag [#allocation3], %s271
        %s273 = sand.u32 %s32, 1
        %s274 = smul.addr %s273, 32
        %s275 = scalar_lea.vmem [#allocation2], %s274
        %p276 = pneg %p45
        %p277 = pneg %p42
        %p278 = pneg %p66
        %p279 = pneg %p63
        %p280 = pneg %p87
        %p281 = pneg %p84
        %p282 = pneg %p108
        %p283 = pneg %p105
        %p284 = pneg %p129
        %p285 = pneg %p126
        %p286 = pneg %p150
        %p287 = pneg %p147
        %p288 = pneg %p171
        %p289 = pneg %p168
        %p290 = pneg %p197
        %p291 = pneg %p194
        %s292 = sand.u32 %s184, 1
        %s293 = scalar_lea.sflag [#allocation4], %s292
        %s294 = sand.u32 %s184, 1
        %s295 = smul.addr %s294, 16
        %s296 = scalar_lea.vmem [#allocation5], %s295
        %s297 = smul.u32 8, %s24
        %s298 = smul.u32 8, %s24
        %v299 = vld [vmem:[%s265] sm:$0xff]
        %v300 = vld [vmem:[%s265 + $0x8] sm:$0xff]
        %v301 = vld [vmem:[%s265 + $0x10] sm:$0xff]
        %v302 = vld [vmem:[%s265 + $0x18] sm:$0xff]
        %v303 = vld [vmem:[%s1] sm:$0xff]
        %v304 = vld [vmem:[%s1 + $0x8] sm:$0xff]
        %v305 = vld [vmem:[%s1 + $0x10] sm:$0xff]
        %v306 = vld [vmem:[%s1 + $0x18] sm:$0xff]
        %v307 = vld [vmem:[%s2] sm:$0xff]
        %v308 = vld [vmem:[%s2 + $0x8] sm:$0xff]
        %v309 = vld [vmem:[%s2 + $0x10] sm:$0xff]
        %v310 = vld [vmem:[%s2 + $0x18] sm:$0xff]
        %312 = vset.pattern.permute.xlu0 0
        %313 = vperm.xlu0 %312, %v307
        %v314 = vpop.permute.xlu0 %313
        %317 = vset.pattern.permute.xlu0 0
        %318 = vperm.xlu0 %317, %v308
        %v319 = vpop.permute.xlu0 %318
        %322 = vset.pattern.permute.xlu0 0
        %323 = vperm.xlu0 %322, %v309
        %v324 = vpop.permute.xlu0 %323
        %327 = vset.pattern.permute.xlu0 0
        %328 = vperm.xlu0 %327, %v310
        %v329 = vpop.permute.xlu0 %328
        %335 = vst [vmem:[#allocation1] ss:$2 sm:$0xff] %v299
        %s336 = scalar_lea.vmem [#allocation1], 16
        %337 = vst [vmem:[%s336] ss:$2 sm:$0xff] %v300
        %s338 = scalar_lea.vmem [#allocation1], 32
        %339 = vst [vmem:[%s338] ss:$2 sm:$0xff] %v301
        %s340 = scalar_lea.vmem [#allocation1], 48
        %341 = vst [vmem:[%s340] ss:$2 sm:$0xff] %v302
        %v342 = vld.sshfl [vmem:[#allocation1] sm:$0xff pattern:$0x75316420]
        %v343 = vld.sshfl [vmem:[#allocation1 + $0x8] sm:$0xff pattern:$0x75316420]
        %v344 = vld.sshfl [vmem:[#allocation1 + $0x10] sm:$0xff pattern:$0x75316420]
        %v345 = vld.sshfl [vmem:[#allocation1 + $0x18] sm:$0xff pattern:$0x75316420]
        %v346 = vld.sshfl [vmem:[#allocation1 + $0x20] sm:$0xff pattern:$0x75316420]
        %v347 = vld.sshfl [vmem:[#allocation1 + $0x28] sm:$0xff pattern:$0x75316420]
        %v348 = vld.sshfl [vmem:[#allocation1 + $0x30] sm:$0xff pattern:$0x75316420]
        %v349 = vld.sshfl [vmem:[#allocation1 + $0x38] sm:$0xff pattern:$0x75316420]
        %vm350 = vcmask 31744
        %v352 = vsel %vm350, %v303, 0
        %v355 = vsel %vm350, %v304, 0
        %v358 = vsel %vm350, %v305, 0
        %v361 = vsel %vm350, %v306, 0
        %vm363 = vcmask 1043456
        %v364 = vsel %vm363, %v342, 0
        %v366 = vsel %vm363, %v343, 0
        %v368 = vsel %vm363, %v344, 0
        %v370 = vsel %vm363, %v345, 0
        %v372 = vsel %vm363, %v346, 0
        %v374 = vsel %vm363, %v347, 0
        %v376 = vsel %vm363, %v348, 0
        %v378 = vsel %vm363, %v349, 0
        %380 = vmatpush.msra.mxu0 0.0
        %381 = vmatpush.msra.mxu0 0.0
        %382 = vmatpush.msra.mxu0 0.0
        %383 = vmatpush.msra.mxu0 0.0
        %384 = vmatpush.msra.mxu0 0.0
        %385 = vmatpush.msra.mxu0 0.0
        %386 = vmatpush.msra.mxu0 0.0
        %387 = vmatpush.msra.mxu0 0.0
        %388 = vmatpush.msra.mxu0 0.0
        %389 = vmatpush.msra.mxu0 0.0
        %390 = vmatpush.msra.mxu0 0.0
        %391 = vmatpush.msra.mxu0 0.0
        %392 = vmatpush.msra.mxu0 0.0
        %393 = vmatpush.msra.mxu0 0.0
        %394 = vmatpush.msra.mxu0 0.0
        %395 = vmatpush.msra.mxu0 %v364
        %396 = vmatmul.f32.gmra.mxu0 %v352
        %v397 = vpop.f32.mrf.mxu0
        %v398 = vadd.f32 %v314, %v397
        %399 = vmatmul.f32.gmra.mxu0 %v355
        %v400 = vpop.f32.mrf.mxu0
        %v401 = vadd.f32 %v319, %v400
        %402 = vmatmul.f32.gmra.mxu0 %v358
        %v403 = vpop.f32.mrf.mxu0
        %v404 = vadd.f32 %v324, %v403
        %405 = vmatmul.f32.gmra.mxu0 %v361
        %v406 = vpop.f32.mrf.mxu0
        %v407 = vadd.f32 %v329, %v406
        %408 = vdwg.mxu0
        %409 = vmatpush.msra.mxu0 0.0
        %410 = vmatpush.msra.mxu0 0.0
        %411 = vmatpush.msra.mxu0 0.0
        %412 = vmatpush.msra.mxu0 0.0
        %413 = vmatpush.msra.mxu0 0.0
        %414 = vmatpush.msra.mxu0 0.0
        %415 = vmatpush.msra.mxu0 0.0
        %416 = vmatpush.msra.mxu0 0.0
        %417 = vmatpush.msra.mxu0 0.0
        %418 = vmatpush.msra.mxu0 0.0
        %419 = vmatpush.msra.mxu0 0.0
        %420 = vmatpush.msra.mxu0 0.0
        %421 = vmatpush.msra.mxu0 0.0
        %422 = vmatpush.msra.mxu0 0.0
        %423 = vmatpush.msra.mxu0 0.0
        %424 = vmatpush.msra.mxu0 %v366
        %425 = vmatmul.f32.gmra.mxu0 %v352
        %v426 = vpop.f32.mrf.mxu0
        %v427 = vadd.f32 %v314, %v426
        %428 = vmatmul.f32.gmra.mxu0 %v355
        %v429 = vpop.f32.mrf.mxu0
        %v430 = vadd.f32 %v319, %v429
        %431 = vmatmul.f32.gmra.mxu0 %v358
        %v432 = vpop.f32.mrf.mxu0
        %v433 = vadd.f32 %v324, %v432
        %434 = vmatmul.f32.gmra.mxu0 %v361
        %v435 = vpop.f32.mrf.mxu0
        %v436 = vadd.f32 %v329, %v435
        %437 = vdwg.mxu0
        %438 = vmatpush.msra.mxu0 0.0
        %439 = vmatpush.msra.mxu0 0.0
        %440 = vmatpush.msra.mxu0 0.0
        %441 = vmatpush.msra.mxu0 0.0
        %442 = vmatpush.msra.mxu0 0.0
        %443 = vmatpush.msra.mxu0 0.0
        %444 = vmatpush.msra.mxu0 0.0
        %445 = vmatpush.msra.mxu0 0.0
        %446 = vmatpush.msra.mxu0 0.0
        %447 = vmatpush.msra.mxu0 0.0
        %448 = vmatpush.msra.mxu0 0.0
        %449 = vmatpush.msra.mxu0 0.0
        %450 = vmatpush.msra.mxu0 0.0
        %451 = vmatpush.msra.mxu0 0.0
        %452 = vmatpush.msra.mxu0 0.0
        %453 = vmatpush.msra.mxu0 %v368
        %454 = vmatmul.f32.gmra.mxu0 %v352
        %v455 = vpop.f32.mrf.mxu0
        %v456 = vadd.f32 %v314, %v455
        %457 = vmatmul.f32.gmra.mxu0 %v355
        %v458 = vpop.f32.mrf.mxu0
        %v459 = vadd.f32 %v319, %v458
        %460 = vmatmul.f32.gmra.mxu0 %v358
        %v461 = vpop.f32.mrf.mxu0
        %v462 = vadd.f32 %v324, %v461
        %463 = vmatmul.f32.gmra.mxu0 %v361
        %v464 = vpop.f32.mrf.mxu0
        %v465 = vadd.f32 %v329, %v464
        %466 = vdwg.mxu0
        %467 = vmatpush.msra.mxu0 0.0
        %468 = vmatpush.msra.mxu0 0.0
        %469 = vmatpush.msra.mxu0 0.0
        %470 = vmatpush.msra.mxu0 0.0
        %471 = vmatpush.msra.mxu0 0.0
        %472 = vmatpush.msra.mxu0 0.0
        %473 = vmatpush.msra.mxu0 0.0
        %474 = vmatpush.msra.mxu0 0.0
        %475 = vmatpush.msra.mxu0 0.0
        %476 = vmatpush.msra.mxu0 0.0
        %477 = vmatpush.msra.mxu0 0.0
        %478 = vmatpush.msra.mxu0 0.0
        %479 = vmatpush.msra.mxu0 0.0
        %480 = vmatpush.msra.mxu0 0.0
        %481 = vmatpush.msra.mxu0 0.0
        %482 = vmatpush.msra.mxu0 %v370
        %483 = vmatmul.f32.gmra.mxu0 %v352
        %v484 = vpop.f32.mrf.mxu0
        %v485 = vadd.f32 %v314, %v484
        %486 = vmatmul.f32.gmra.mxu0 %v355
        %v487 = vpop.f32.mrf.mxu0
        %v488 = vadd.f32 %v319, %v487
        %489 = vmatmul.f32.gmra.mxu0 %v358
        %v490 = vpop.f32.mrf.mxu0
        %v491 = vadd.f32 %v324, %v490
        %492 = vmatmul.f32.gmra.mxu0 %v361
        %v493 = vpop.f32.mrf.mxu0
        %v494 = vadd.f32 %v329, %v493
        %495 = vdwg.mxu0
        %496 = vmatpush.msra.mxu0 0.0
        %497 = vmatpush.msra.mxu0 0.0
        %498 = vmatpush.msra.mxu0 0.0
        %499 = vmatpush.msra.mxu0 0.0
        %500 = vmatpush.msra.mxu0 0.0
        %501 = vmatpush.msra.mxu0 0.0
        %502 = vmatpush.msra.mxu0 0.0
        %503 = vmatpush.msra.mxu0 0.0
        %504 = vmatpush.msra.mxu0 0.0
        %505 = vmatpush.msra.mxu0 0.0
        %506 = vmatpush.msra.mxu0 0.0
        %507 = vmatpush.msra.mxu0 0.0
        %508 = vmatpush.msra.mxu0 0.0
        %509 = vmatpush.msra.mxu0 0.0
        %510 = vmatpush.msra.mxu0 0.0
        %511 = vmatpush.msra.mxu0 %v372
        %512 = vmatmul.f32.gmra.mxu0 %v352
        %v513 = vpop.f32.mrf.mxu0
        %v514 = vadd.f32 %v314, %v513
        %515 = vmatmul.f32.gmra.mxu0 %v355
        %v516 = vpop.f32.mrf.mxu0
        %v517 = vadd.f32 %v319, %v516
        %518 = vmatmul.f32.gmra.mxu0 %v358
        %v519 = vpop.f32.mrf.mxu0
        %v520 = vadd.f32 %v324, %v519
        %521 = vmatmul.f32.gmra.mxu0 %v361
        %v522 = vpop.f32.mrf.mxu0
        %v523 = vadd.f32 %v329, %v522
        %524 = vdwg.mxu0
        %525 = vmatpush.msra.mxu0 0.0
        %526 = vmatpush.msra.mxu0 0.0
        %527 = vmatpush.msra.mxu0 0.0
        %528 = vmatpush.msra.mxu0 0.0
        %529 = vmatpush.msra.mxu0 0.0
        %530 = vmatpush.msra.mxu0 0.0
        %531 = vmatpush.msra.mxu0 0.0
        %532 = vmatpush.msra.mxu0 0.0
        %533 = vmatpush.msra.mxu0 0.0
        %534 = vmatpush.msra.mxu0 0.0
        %535 = vmatpush.msra.mxu0 0.0
        %536 = vmatpush.msra.mxu0 0.0
        %537 = vmatpush.msra.mxu0 0.0
        %538 = vmatpush.msra.mxu0 0.0
        %539 = vmatpush.msra.mxu0 0.0
        %540 = vmatpush.msra.mxu0 %v374
        %541 = vmatmul.f32.gmra.mxu0 %v352
        %v542 = vpop.f32.mrf.mxu0
        %v543 = vadd.f32 %v314, %v542
        %544 = vmatmul.f32.gmra.mxu0 %v355
        %v545 = vpop.f32.mrf.mxu0
        %v546 = vadd.f32 %v319, %v545
        %547 = vmatmul.f32.gmra.mxu0 %v358
        %v548 = vpop.f32.mrf.mxu0
        %v549 = vadd.f32 %v324, %v548
        %550 = vmatmul.f32.gmra.mxu0 %v361
        %v551 = vpop.f32.mrf.mxu0
        %v552 = vadd.f32 %v329, %v551
        %553 = vdwg.mxu0
        %554 = vmatpush.msra.mxu0 0.0
        %555 = vmatpush.msra.mxu0 0.0
        %556 = vmatpush.msra.mxu0 0.0
        %557 = vmatpush.msra.mxu0 0.0
        %558 = vmatpush.msra.mxu0 0.0
        %559 = vmatpush.msra.mxu0 0.0
        %560 = vmatpush.msra.mxu0 0.0
        %561 = vmatpush.msra.mxu0 0.0
        %562 = vmatpush.msra.mxu0 0.0
        %563 = vmatpush.msra.mxu0 0.0
        %564 = vmatpush.msra.mxu0 0.0
        %565 = vmatpush.msra.mxu0 0.0
        %566 = vmatpush.msra.mxu0 0.0
        %567 = vmatpush.msra.mxu0 0.0
        %568 = vmatpush.msra.mxu0 0.0
        %569 = vmatpush.msra.mxu0 %v376
        %570 = vmatmul.f32.gmra.mxu0 %v352
        %v571 = vpop.f32.mrf.mxu0
        %v572 = vadd.f32 %v314, %v571
        %573 = vmatmul.f32.gmra.mxu0 %v355
        %v574 = vpop.f32.mrf.mxu0
        %v575 = vadd.f32 %v319, %v574
        %576 = vmatmul.f32.gmra.mxu0 %v358
        %v577 = vpop.f32.mrf.mxu0
        %v578 = vadd.f32 %v324, %v577
        %579 = vmatmul.f32.gmra.mxu0 %v361
        %v580 = vpop.f32.mrf.mxu0
        %v581 = vadd.f32 %v329, %v580
        %582 = vdwg.mxu0
        %583 = vmatpush.msra.mxu0 0.0
        %584 = vmatpush.msra.mxu0 0.0
        %585 = vmatpush.msra.mxu0 0.0
        %586 = vmatpush.msra.mxu0 0.0
        %587 = vmatpush.msra.mxu0 0.0
        %588 = vmatpush.msra.mxu0 0.0
        %589 = vmatpush.msra.mxu0 0.0
        %590 = vmatpush.msra.mxu0 0.0
        %591 = vmatpush.msra.mxu0 0.0
        %592 = vmatpush.msra.mxu0 0.0
        %593 = vmatpush.msra.mxu0 0.0
        %594 = vmatpush.msra.mxu0 0.0
        %595 = vmatpush.msra.mxu0 0.0
        %596 = vmatpush.msra.mxu0 0.0
        %597 = vmatpush.msra.mxu0 0.0
        %598 = vmatpush.msra.mxu0 %v378
        %599 = vmatmul.f32.gmra.mxu0 %v352
        %v600 = vpop.f32.mrf.mxu0
        %v601 = vadd.f32 %v314, %v600
        %602 = vmatmul.f32.gmra.mxu0 %v355
        %v603 = vpop.f32.mrf.mxu0
        %v604 = vadd.f32 %v319, %v603
        %605 = vmatmul.f32.gmra.mxu0 %v358
        %v606 = vpop.f32.mrf.mxu0
        %v607 = vadd.f32 %v324, %v606
        %608 = vmatmul.f32.gmra.mxu0 %v361
        %v609 = vpop.f32.mrf.mxu0
        %v610 = vadd.f32 %v329, %v609
        %611 = vdwg.mxu0
        %v612 = vmax.f32 %v398, 0.0
        %v613 = vmax.f32 %v427, 0.0
        %v614 = vmax.f32 %v456, 0.0
        %v615 = vmax.f32 %v485, 0.0
        %v616 = vmax.f32 %v514, 0.0
        %v617 = vmax.f32 %v543, 0.0
        %v618 = vmax.f32 %v572, 0.0
        %v619 = vmax.f32 %v601, 0.0
        %v620 = vmax.f32 %v401, 0.0
        %v621 = vmax.f32 %v430, 0.0
        %v622 = vmax.f32 %v459, 0.0
        %v623 = vmax.f32 %v488, 0.0
        %v624 = vmax.f32 %v517, 0.0
        %v625 = vmax.f32 %v546, 0.0
        %v626 = vmax.f32 %v575, 0.0
        %v627 = vmax.f32 %v604, 0.0
        %v628 = vmax.f32 %v404, 0.0
        %v629 = vmax.f32 %v433, 0.0
        %v630 = vmax.f32 %v462, 0.0
        %v631 = vmax.f32 %v491, 0.0
        %v632 = vmax.f32 %v520, 0.0
        %v633 = vmax.f32 %v549, 0.0
        %v634 = vmax.f32 %v578, 0.0
        %v635 = vmax.f32 %v607, 0.0
        %v636 = vmax.f32 %v407, 0.0
        %v637 = vmax.f32 %v436, 0.0
        %v638 = vmax.f32 %v465, 0.0
        %v639 = vmax.f32 %v494, 0.0
        %v640 = vmax.f32 %v523, 0.0
        %v641 = vmax.f32 %v552, 0.0
        %v642 = vmax.f32 %v581, 0.0
        %v643 = vmax.f32 %v610, 0.0
        %v644 = vld [vmem:[%s3] sm:$0xff]
        %v645 = vld [vmem:[%s3 + $0x8] sm:$0xff]
        %v646 = vld [vmem:[%s3 + $0x10] sm:$0xff]
        %v647 = vld [vmem:[%s3 + $0x18] sm:$0xff]
        %v648 = vld [vmem:[%s4] sm:$0xff]
        %v649 = vld [vmem:[%s4 + $0x8] sm:$0xff]
        %v650 = vld [vmem:[%s4 + $0x10] sm:$0xff]
        %v651 = vld [vmem:[%s4 + $0x18] sm:$0xff]
        %653 = vset.pattern.permute.xlu0 0
        %654 = vperm.xlu0 %653, %v648
        %v655 = vpop.permute.xlu0 %654
        %658 = vset.pattern.permute.xlu0 0
        %659 = vperm.xlu0 %658, %v649
        %v660 = vpop.permute.xlu0 %659
        %663 = vset.pattern.permute.xlu0 0
        %664 = vperm.xlu0 %663, %v650
        %v665 = vpop.permute.xlu0 %664
        %668 = vset.pattern.permute.xlu0 0
        %669 = vperm.xlu0 %668, %v651
        %v670 = vpop.permute.xlu0 %669
        %vm672 = vcmask 261120
        %v674 = vsel %vm672, %v644, 0
        %v677 = vsel %vm672, %v645, 0
        %v680 = vsel %vm672, %v646, 0
        %v683 = vsel %vm672, %v647, 0
        %685 = vmatpush.msra.mxu0 0.0
        %686 = vmatpush.msra.mxu0 0.0
        %687 = vmatpush.msra.mxu0 0.0
        %688 = vmatpush.msra.mxu0 0.0
        %689 = vmatpush.msra.mxu0 0.0
        %690 = vmatpush.msra.mxu0 0.0
        %691 = vmatpush.msra.mxu0 0.0
        %692 = vmatpush.msra.mxu0 0.0
        %693 = vmatpush.msra.mxu0 0.0
        %694 = vmatpush.msra.mxu0 0.0
        %695 = vmatpush.msra.mxu0 0.0
        %696 = vmatpush.msra.mxu0 0.0
        %697 = vmatpush.msra.mxu0 %v636
        %698 = vmatpush.msra.mxu0 %v628
        %699 = vmatpush.msra.mxu0 %v620
        %700 = vmatpush.msra.mxu0 %v612
        %701 = vmatmul.f32.gmra.mxu0 %v674
        %v702 = vpop.f32.mrf.mxu0
        %v703 = vadd.f32 %v655, %v702
        %704 = vmatmul.f32.gmra.mxu0 %v677
        %v705 = vpop.f32.mrf.mxu0
        %v706 = vadd.f32 %v660, %v705
        %707 = vmatmul.f32.gmra.mxu0 %v680
        %v708 = vpop.f32.mrf.mxu0
        %v709 = vadd.f32 %v665, %v708
        %710 = vmatmul.f32.gmra.mxu0 %v683
        %v711 = vpop.f32.mrf.mxu0
        %v712 = vadd.f32 %v670, %v711
        %713 = vdwg.mxu0
        %714 = vmatpush.msra.mxu0 0.0
        %715 = vmatpush.msra.mxu0 0.0
        %716 = vmatpush.msra.mxu0 0.0
        %717 = vmatpush.msra.mxu0 0.0
        %718 = vmatpush.msra.mxu0 0.0
        %719 = vmatpush.msra.mxu0 0.0
        %720 = vmatpush.msra.mxu0 0.0
        %721 = vmatpush.msra.mxu0 0.0
        %722 = vmatpush.msra.mxu0 0.0
        %723 = vmatpush.msra.mxu0 0.0
        %724 = vmatpush.msra.mxu0 0.0
        %725 = vmatpush.msra.mxu0 0.0
        %726 = vmatpush.msra.mxu0 %v637
        %727 = vmatpush.msra.mxu0 %v629
        %728 = vmatpush.msra.mxu0 %v621
        %729 = vmatpush.msra.mxu0 %v613
        %730 = vmatmul.f32.gmra.mxu0 %v674
        %v731 = vpop.f32.mrf.mxu0
        %v732 = vadd.f32 %v655, %v731
        %733 = vmatmul.f32.gmra.mxu0 %v677
        %v734 = vpop.f32.mrf.mxu0
        %v735 = vadd.f32 %v660, %v734
        %736 = vmatmul.f32.gmra.mxu0 %v680
        %v737 = vpop.f32.mrf.mxu0
        %v738 = vadd.f32 %v665, %v737
        %739 = vmatmul.f32.gmra.mxu0 %v683
        %v740 = vpop.f32.mrf.mxu0
        %v741 = vadd.f32 %v670, %v740
        %742 = vdwg.mxu0
        %743 = vmatpush.msra.mxu0 0.0
        %744 = vmatpush.msra.mxu0 0.0
        %745 = vmatpush.msra.mxu0 0.0
        %746 = vmatpush.msra.mxu0 0.0
        %747 = vmatpush.msra.mxu0 0.0
        %748 = vmatpush.msra.mxu0 0.0
        %749 = vmatpush.msra.mxu0 0.0
        %750 = vmatpush.msra.mxu0 0.0
        %751 = vmatpush.msra.mxu0 0.0
        %752 = vmatpush.msra.mxu0 0.0
        %753 = vmatpush.msra.mxu0 0.0
        %754 = vmatpush.msra.mxu0 0.0
        %755 = vmatpush.msra.mxu0 %v638
        %756 = vmatpush.msra.mxu0 %v630
        %757 = vmatpush.msra.mxu0 %v622
        %758 = vmatpush.msra.mxu0 %v614
        %759 = vmatmul.f32.gmra.mxu0 %v674
        %v760 = vpop.f32.mrf.mxu0
        %v761 = vadd.f32 %v655, %v760
        %762 = vmatmul.f32.gmra.mxu0 %v677
        %v763 = vpop.f32.mrf.mxu0
        %v764 = vadd.f32 %v660, %v763
        %765 = vmatmul.f32.gmra.mxu0 %v680
        %v766 = vpop.f32.mrf.mxu0
        %v767 = vadd.f32 %v665, %v766
        %768 = vmatmul.f32.gmra.mxu0 %v683
        %v769 = vpop.f32.mrf.mxu0
        %v770 = vadd.f32 %v670, %v769
        %771 = vdwg.mxu0
        %772 = vmatpush.msra.mxu0 0.0
        %773 = vmatpush.msra.mxu0 0.0
        %774 = vmatpush.msra.mxu0 0.0
        %775 = vmatpush.msra.mxu0 0.0
        %776 = vmatpush.msra.mxu0 0.0
        %777 = vmatpush.msra.mxu0 0.0
        %778 = vmatpush.msra.mxu0 0.0
        %779 = vmatpush.msra.mxu0 0.0
        %780 = vmatpush.msra.mxu0 0.0
        %781 = vmatpush.msra.mxu0 0.0
        %782 = vmatpush.msra.mxu0 0.0
        %783 = vmatpush.msra.mxu0 0.0
        %784 = vmatpush.msra.mxu0 %v639
        %785 = vmatpush.msra.mxu0 %v631
        %786 = vmatpush.msra.mxu0 %v623
        %787 = vmatpush.msra.mxu0 %v615
        %788 = vmatmul.f32.gmra.mxu0 %v674
        %v789 = vpop.f32.mrf.mxu0
        %v790 = vadd.f32 %v655, %v789
        %791 = vmatmul.f32.gmra.mxu0 %v677
        %v792 = vpop.f32.mrf.mxu0
        %v793 = vadd.f32 %v660, %v792
        %794 = vmatmul.f32.gmra.mxu0 %v680
        %v795 = vpop.f32.mrf.mxu0
        %v796 = vadd.f32 %v665, %v795
        %797 = vmatmul.f32.gmra.mxu0 %v683
        %v798 = vpop.f32.mrf.mxu0
        %v799 = vadd.f32 %v670, %v798
        %800 = vdwg.mxu0
        %801 = vmatpush.msra.mxu0 0.0
        %802 = vmatpush.msra.mxu0 0.0
        %803 = vmatpush.msra.mxu0 0.0
        %804 = vmatpush.msra.mxu0 0.0
        %805 = vmatpush.msra.mxu0 0.0
        %806 = vmatpush.msra.mxu0 0.0
        %807 = vmatpush.msra.mxu0 0.0
        %808 = vmatpush.msra.mxu0 0.0
        %809 = vmatpush.msra.mxu0 0.0
        %810 = vmatpush.msra.mxu0 0.0
        %811 = vmatpush.msra.mxu0 0.0
        %812 = vmatpush.msra.mxu0 0.0
        %813 = vmatpush.msra.mxu0 %v640
        %814 = vmatpush.msra.mxu0 %v632
        %815 = vmatpush.msra.mxu0 %v624
        %816 = vmatpush.msra.mxu0 %v616
        %817 = vmatmul.f32.gmra.mxu0 %v674
        %v818 = vpop.f32.mrf.mxu0
        %v819 = vadd.f32 %v655, %v818
        %820 = vmatmul.f32.gmra.mxu0 %v677
        %v821 = vpop.f32.mrf.mxu0
        %v822 = vadd.f32 %v660, %v821
        %823 = vmatmul.f32.gmra.mxu0 %v680
        %v824 = vpop.f32.mrf.mxu0
        %v825 = vadd.f32 %v665, %v824
        %826 = vmatmul.f32.gmra.mxu0 %v683
        %v827 = vpop.f32.mrf.mxu0
        %v828 = vadd.f32 %v670, %v827
        %829 = vdwg.mxu0
        %830 = vmatpush.msra.mxu0 0.0
        %831 = vmatpush.msra.mxu0 0.0
        %832 = vmatpush.msra.mxu0 0.0
        %833 = vmatpush.msra.mxu0 0.0
        %834 = vmatpush.msra.mxu0 0.0
        %835 = vmatpush.msra.mxu0 0.0
        %836 = vmatpush.msra.mxu0 0.0
        %837 = vmatpush.msra.mxu0 0.0
        %838 = vmatpush.msra.mxu0 0.0
        %839 = vmatpush.msra.mxu0 0.0
        %840 = vmatpush.msra.mxu0 0.0
        %841 = vmatpush.msra.mxu0 0.0
        %842 = vmatpush.msra.mxu0 %v641
        %843 = vmatpush.msra.mxu0 %v633
        %844 = vmatpush.msra.mxu0 %v625
        %845 = vmatpush.msra.mxu0 %v617
        %846 = vmatmul.f32.gmra.mxu0 %v674
        %v847 = vpop.f32.mrf.mxu0
        %v848 = vadd.f32 %v655, %v847
        %849 = vmatmul.f32.gmra.mxu0 %v677
        %v850 = vpop.f32.mrf.mxu0
        %v851 = vadd.f32 %v660, %v850
        %852 = vmatmul.f32.gmra.mxu0 %v680
        %v853 = vpop.f32.mrf.mxu0
        %v854 = vadd.f32 %v665, %v853
        %855 = vmatmul.f32.gmra.mxu0 %v683
        %v856 = vpop.f32.mrf.mxu0
        %v857 = vadd.f32 %v670, %v856
        %858 = vdwg.mxu0
        %859 = vmatpush.msra.mxu0 0.0
        %860 = vmatpush.msra.mxu0 0.0
        %861 = vmatpush.msra.mxu0 0.0
        %862 = vmatpush.msra.mxu0 0.0
        %863 = vmatpush.msra.mxu0 0.0
        %864 = vmatpush.msra.mxu0 0.0
        %865 = vmatpush.msra.mxu0 0.0
        %866 = vmatpush.msra.mxu0 0.0
        %867 = vmatpush.msra.mxu0 0.0
        %868 = vmatpush.msra.mxu0 0.0
        %869 = vmatpush.msra.mxu0 0.0
        %870 = vmatpush.msra.mxu0 0.0
        %871 = vmatpush.msra.mxu0 %v642
        %872 = vmatpush.msra.mxu0 %v634
        %873 = vmatpush.msra.mxu0 %v626
        %874 = vmatpush.msra.mxu0 %v618
        %875 = vmatmul.f32.gmra.mxu0 %v674
        %v876 = vpop.f32.mrf.mxu0
        %v877 = vadd.f32 %v655, %v876
        %878 = vmatmul.f32.gmra.mxu0 %v677
        %v879 = vpop.f32.mrf.mxu0
        %v880 = vadd.f32 %v660, %v879
        %881 = vmatmul.f32.gmra.mxu0 %v680
        %v882 = vpop.f32.mrf.mxu0
        %v883 = vadd.f32 %v665, %v882
        %884 = vmatmul.f32.gmra.mxu0 %v683
        %v885 = vpop.f32.mrf.mxu0
        %v886 = vadd.f32 %v670, %v885
        %887 = vdwg.mxu0
        %888 = vmatpush.msra.mxu0 0.0
        %889 = vmatpush.msra.mxu0 0.0
        %890 = vmatpush.msra.mxu0 0.0
        %891 = vmatpush.msra.mxu0 0.0
        %892 = vmatpush.msra.mxu0 0.0
        %893 = vmatpush.msra.mxu0 0.0
        %894 = vmatpush.msra.mxu0 0.0
        %895 = vmatpush.msra.mxu0 0.0
        %896 = vmatpush.msra.mxu0 0.0
        %897 = vmatpush.msra.mxu0 0.0
        %898 = vmatpush.msra.mxu0 0.0
        %899 = vmatpush.msra.mxu0 0.0
        %900 = vmatpush.msra.mxu0 %v643
        %901 = vmatpush.msra.mxu0 %v635
        %902 = vmatpush.msra.mxu0 %v627
        %903 = vmatpush.msra.mxu0 %v619
        %904 = vmatmul.f32.gmra.mxu0 %v674
        %v905 = vpop.f32.mrf.mxu0
        %v906 = vadd.f32 %v655, %v905
        %907 = vmatmul.f32.gmra.mxu0 %v677
        %v908 = vpop.f32.mrf.mxu0
        %v909 = vadd.f32 %v660, %v908
        %910 = vmatmul.f32.gmra.mxu0 %v680
        %v911 = vpop.f32.mrf.mxu0
        %v912 = vadd.f32 %v665, %v911
        %913 = vmatmul.f32.gmra.mxu0 %v683
        %v914 = vpop.f32.mrf.mxu0
        %v915 = vadd.f32 %v670, %v914
        %916 = vdwg.mxu0
        %v917 = vmax.f32 %v703, 0.0
        %v918 = vmax.f32 %v732, 0.0
        %v919 = vmax.f32 %v761, 0.0
        %v920 = vmax.f32 %v790, 0.0
        %v921 = vmax.f32 %v819, 0.0
        %v922 = vmax.f32 %v848, 0.0
        %v923 = vmax.f32 %v877, 0.0
        %v924 = vmax.f32 %v906, 0.0
        %v925 = vmax.f32 %v706, 0.0
        %v926 = vmax.f32 %v735, 0.0
        %v927 = vmax.f32 %v764, 0.0
        %v928 = vmax.f32 %v793, 0.0
        %v929 = vmax.f32 %v822, 0.0
        %v930 = vmax.f32 %v851, 0.0
        %v931 = vmax.f32 %v880, 0.0
        %v932 = vmax.f32 %v909, 0.0
        %v933 = vmax.f32 %v709, 0.0
        %v934 = vmax.f32 %v738, 0.0
        %v935 = vmax.f32 %v767, 0.0
        %v936 = vmax.f32 %v796, 0.0
        %v937 = vmax.f32 %v825, 0.0
        %v938 = vmax.f32 %v854, 0.0
        %v939 = vmax.f32 %v883, 0.0
        %v940 = vmax.f32 %v912, 0.0
        %v941 = vmax.f32 %v712, 0.0
        %v942 = vmax.f32 %v741, 0.0
        %v943 = vmax.f32 %v770, 0.0
        %v944 = vmax.f32 %v799, 0.0
        %v945 = vmax.f32 %v828, 0.0
        %v946 = vmax.f32 %v857, 0.0
        %v947 = vmax.f32 %v886, 0.0
        %v948 = vmax.f32 %v915, 0.0
        %v949 = vld [vmem:[%s5] sm:$0x3]
        %v950 = vld [vmem:[%s6] sm:$0x3]
        %952 = vset.pattern.permute.xlu0 0
        %953 = vperm.xlu0 %952, %v950
        %v954 = vpop.permute.xlu0 %953
        %v957 = vsel %vm672, %v949, 0
        %959 = vmatpush.msra.mxu0 0.0
        %960 = vmatpush.msra.mxu0 0.0
        %961 = vmatpush.msra.mxu0 0.0
        %962 = vmatpush.msra.mxu0 0.0
        %963 = vmatpush.msra.mxu0 0.0
        %964 = vmatpush.msra.mxu0 0.0
        %965 = vmatpush.msra.mxu0 0.0
        %966 = vmatpush.msra.mxu0 0.0
        %967 = vmatpush.msra.mxu0 0.0
        %968 = vmatpush.msra.mxu0 0.0
        %969 = vmatpush.msra.mxu0 0.0
        %970 = vmatpush.msra.mxu0 0.0
        %971 = vmatpush.msra.mxu0 %v941
        %972 = vmatpush.msra.mxu0 %v933
        %973 = vmatpush.msra.mxu0 %v925
        %974 = vmatpush.msra.mxu0 %v917
        %975 = vmatmul.f32.gmra.mxu0 %v957
        %v976 = vpop.f32.mrf.mxu0
        %v977 = vadd.f32 %v954, %v976
        %978 = vdwg.mxu0
        %979 = vmatpush.msra.mxu0 0.0
        %980 = vmatpush.msra.mxu0 0.0
        %981 = vmatpush.msra.mxu0 0.0
        %982 = vmatpush.msra.mxu0 0.0
        %983 = vmatpush.msra.mxu0 0.0
        %984 = vmatpush.msra.mxu0 0.0
        %985 = vmatpush.msra.mxu0 0.0
        %986 = vmatpush.msra.mxu0 0.0
        %987 = vmatpush.msra.mxu0 0.0
        %988 = vmatpush.msra.mxu0 0.0
        %989 = vmatpush.msra.mxu0 0.0
        %990 = vmatpush.msra.mxu0 0.0
        %991 = vmatpush.msra.mxu0 %v942
        %992 = vmatpush.msra.mxu0 %v934
        %993 = vmatpush.msra.mxu0 %v926
        %994 = vmatpush.msra.mxu0 %v918
        %995 = vmatmul.f32.gmra.mxu0 %v957
        %v996 = vpop.f32.mrf.mxu0
        %v997 = vadd.f32 %v954, %v996
        %998 = vdwg.mxu0
        %999 = vmatpush.msra.mxu0 0.0
        %1000 = vmatpush.msra.mxu0 0.0
        %1001 = vmatpush.msra.mxu0 0.0
        %1002 = vmatpush.msra.mxu0 0.0
        %1003 = vmatpush.msra.mxu0 0.0
        %1004 = vmatpush.msra.mxu0 0.0
        %1005 = vmatpush.msra.mxu0 0.0
        %1006 = vmatpush.msra.mxu0 0.0
        %1007 = vmatpush.msra.mxu0 0.0
        %1008 = vmatpush.msra.mxu0 0.0
        %1009 = vmatpush.msra.mxu0 0.0
        %1010 = vmatpush.msra.mxu0 0.0
        %1011 = vmatpush.msra.mxu0 %v943
        %1012 = vmatpush.msra.mxu0 %v935
        %1013 = vmatpush.msra.mxu0 %v927
        %1014 = vmatpush.msra.mxu0 %v919
        %1015 = vmatmul.f32.gmra.mxu0 %v957
        %v1016 = vpop.f32.mrf.mxu0
        %v1017 = vadd.f32 %v954, %v1016
        %1018 = vdwg.mxu0
        %1019 = vmatpush.msra.mxu0 0.0
        %1020 = vmatpush.msra.mxu0 0.0
        %1021 = vmatpush.msra.mxu0 0.0
        %1022 = vmatpush.msra.mxu0 0.0
        %1023 = vmatpush.msra.mxu0 0.0
        %1024 = vmatpush.msra.mxu0 0.0
        %1025 = vmatpush.msra.mxu0 0.0
        %1026 = vmatpush.msra.mxu0 0.0
        %1027 = vmatpush.msra.mxu0 0.0
        %1028 = vmatpush.msra.mxu0 0.0
        %1029 = vmatpush.msra.mxu0 0.0
        %1030 = vmatpush.msra.mxu0 0.0
        %1031 = vmatpush.msra.mxu0 %v944
        %1032 = vmatpush.msra.mxu0 %v936
        %1033 = vmatpush.msra.mxu0 %v928
        %1034 = vmatpush.msra.mxu0 %v920
        %1035 = vmatmul.f32.gmra.mxu0 %v957
        %v1036 = vpop.f32.mrf.mxu0
        %v1037 = vadd.f32 %v954, %v1036
        %1038 = vdwg.mxu0
        %1039 = vmatpush.msra.mxu0 0.0
        %1040 = vmatpush.msra.mxu0 0.0
        %1041 = vmatpush.msra.mxu0 0.0
        %1042 = vmatpush.msra.mxu0 0.0
        %1043 = vmatpush.msra.mxu0 0.0
        %1044 = vmatpush.msra.mxu0 0.0
        %1045 = vmatpush.msra.mxu0 0.0
        %1046 = vmatpush.msra.mxu0 0.0
        %1047 = vmatpush.msra.mxu0 0.0
        %1048 = vmatpush.msra.mxu0 0.0
        %1049 = vmatpush.msra.mxu0 0.0
        %1050 = vmatpush.msra.mxu0 0.0
        %1051 = vmatpush.msra.mxu0 %v945
        %1052 = vmatpush.msra.mxu0 %v937
        %1053 = vmatpush.msra.mxu0 %v929
        %1054 = vmatpush.msra.mxu0 %v921
        %1055 = vmatmul.f32.gmra.mxu0 %v957
        %v1056 = vpop.f32.mrf.mxu0
        %v1057 = vadd.f32 %v954, %v1056
        %1058 = vdwg.mxu0
        %1059 = vmatpush.msra.mxu0 0.0
        %1060 = vmatpush.msra.mxu0 0.0
        %1061 = vmatpush.msra.mxu0 0.0
        %1062 = vmatpush.msra.mxu0 0.0
        %1063 = vmatpush.msra.mxu0 0.0
        %1064 = vmatpush.msra.mxu0 0.0
        %1065 = vmatpush.msra.mxu0 0.0
        %1066 = vmatpush.msra.mxu0 0.0
        %1067 = vmatpush.msra.mxu0 0.0
        %1068 = vmatpush.msra.mxu0 0.0
        %1069 = vmatpush.msra.mxu0 0.0
        %1070 = vmatpush.msra.mxu0 0.0
        %1071 = vmatpush.msra.mxu0 %v946
        %1072 = vmatpush.msra.mxu0 %v938
        %1073 = vmatpush.msra.mxu0 %v930
        %1074 = vmatpush.msra.mxu0 %v922
        %1075 = vmatmul.f32.gmra.mxu0 %v957
        %v1076 = vpop.f32.mrf.mxu0
        %v1077 = vadd.f32 %v954, %v1076
        %1078 = vdwg.mxu0
        %1079 = vmatpush.msra.mxu0 0.0
        %1080 = vmatpush.msra.mxu0 0.0
        %1081 = vmatpush.msra.mxu0 0.0
        %1082 = vmatpush.msra.mxu0 0.0
        %1083 = vmatpush.msra.mxu0 0.0
        %1084 = vmatpush.msra.mxu0 0.0
        %1085 = vmatpush.msra.mxu0 0.0
        %1086 = vmatpush.msra.mxu0 0.0
        %1087 = vmatpush.msra.mxu0 0.0
        %1088 = vmatpush.msra.mxu0 0.0
        %1089 = vmatpush.msra.mxu0 0.0
        %1090 = vmatpush.msra.mxu0 0.0
        %1091 = vmatpush.msra.mxu0 %v947
        %1092 = vmatpush.msra.mxu0 %v939
        %1093 = vmatpush.msra.mxu0 %v931
        %1094 = vmatpush.msra.mxu0 %v923
        %1095 = vmatmul.f32.gmra.mxu0 %v957
        %v1096 = vpop.f32.mrf.mxu0
        %v1097 = vadd.f32 %v954, %v1096
        %1098 = vdwg.mxu0
        %1099 = vmatpush.msra.mxu0 0.0
        %1100 = vmatpush.msra.mxu0 0.0
        %1101 = vmatpush.msra.mxu0 0.0
        %1102 = vmatpush.msra.mxu0 0.0
        %1103 = vmatpush.msra.mxu0 0.0
        %1104 = vmatpush.msra.mxu0 0.0
        %1105 = vmatpush.msra.mxu0 0.0
        %1106 = vmatpush.msra.mxu0 0.0
        %1107 = vmatpush.msra.mxu0 0.0
        %1108 = vmatpush.msra.mxu0 0.0
        %1109 = vmatpush.msra.mxu0 0.0
        %1110 = vmatpush.msra.mxu0 0.0
        %1111 = vmatpush.msra.mxu0 %v948
        %1112 = vmatpush.msra.mxu0 %v940
        %1113 = vmatpush.msra.mxu0 %v932
        %1114 = vmatpush.msra.mxu0 %v924
        %1115 = vmatmul.f32.gmra.mxu0 %v957
        %v1116 = vpop.f32.mrf.mxu0
        %v1117 = vadd.f32 %v954, %v1116
        %1118 = vdwg.mxu0
        %v1119 = vxor.u32 %v977, 2147483648
        %v1120 = vxor.u32 %v997, 2147483648
        %v1121 = vxor.u32 %v1017, 2147483648
        %v1122 = vxor.u32 %v1037, 2147483648
        %v1123 = vxor.u32 %v1057, 2147483648
        %v1124 = vxor.u32 %v1077, 2147483648
        %v1125 = vxor.u32 %v1097, 2147483648
        %v1126 = vxor.u32 %v1117, 2147483648
        %v1127 = vmul.f32 %v1119, 1.442695
        %v1128 = vpow.pop %v1127
        %v1129 = vmul.f32 %v1120, 1.442695
        %v1130 = vpow.pop %v1129
        %v1131 = vmul.f32 %v1121, 1.442695
        %v1132 = vpow.pop %v1131
        %v1133 = vmul.f32 %v1122, 1.442695
        %v1134 = vpow.pop %v1133
        %v1135 = vmul.f32 %v1123, 1.442695
        %v1136 = vpow.pop %v1135
        %v1137 = vmul.f32 %v1124, 1.442695
        %v1138 = vpow.pop %v1137
        %v1139 = vmul.f32 %v1125, 1.442695
        %v1140 = vpow.pop %v1139
        %v1141 = vmul.f32 %v1126, 1.442695
        %v1142 = vpow.pop %v1141
        %v1143 = vadd.f32 %v1128, 1.0
        %v1144 = vadd.f32 %v1130, 1.0
        %v1145 = vadd.f32 %v1132, 1.0
        %v1146 = vadd.f32 %v1134, 1.0
        %v1147 = vadd.f32 %v1136, 1.0
        %v1148 = vadd.f32 %v1138, 1.0
        %v1149 = vadd.f32 %v1140, 1.0
        %v1150 = vadd.f32 %v1142, 1.0
        %v1151 = vrcp.pop %v1143
        %v1152 = vmul.f32 %v1143, %v1151
        %v1153 = vsub.f32 1.0, %v1152
        %v1154 = vmul.f32 %v1151, %v1153
        %v1155 = vadd.f32 %v1151, %v1154
        %vm1156 = vweird.f32 %v1143
        %vm1157 = vweird.f32 %v1151
        %vm1158 = vmor %vm1156, %vm1157
        %v1159 = vsel %vm1158, %v1151, %v1155
        %v1160 = vand.u32 2147483647, %v1143
        %vm1161 = vcmp.eq.f32.partialorder %v1160, 8.507059e+37
        %v1162 = vand.u32 %v1143, 2147483648
        %v1163 = vor.u32 1.1754944e-38, %v1162
        %v1164 = vsel %vm1161, %v1163, %v1159
        %v1165 = vmul.f32 1.0, %v1164
        %v1166 = vrcp.pop %v1144
        %v1167 = vmul.f32 %v1144, %v1166
        %v1168 = vsub.f32 1.0, %v1167
        %v1169 = vmul.f32 %v1166, %v1168
        %v1170 = vadd.f32 %v1166, %v1169
        %vm1171 = vweird.f32 %v1144
        %vm1172 = vweird.f32 %v1166
        %vm1173 = vmor %vm1171, %vm1172
        %v1174 = vsel %vm1173, %v1166, %v1170
        %v1175 = vand.u32 2147483647, %v1144
        %vm1176 = vcmp.eq.f32.partialorder %v1175, 8.507059e+37
        %v1177 = vand.u32 %v1144, 2147483648
        %v1178 = vor.u32 1.1754944e-38, %v1177
        %v1179 = vsel %vm1176, %v1178, %v1174
        %v1180 = vmul.f32 1.0, %v1179
        %v1181 = vrcp.pop %v1145
        %v1182 = vmul.f32 %v1145, %v1181
        %v1183 = vsub.f32 1.0, %v1182
        %v1184 = vmul.f32 %v1181, %v1183
        %v1185 = vadd.f32 %v1181, %v1184
        %vm1186 = vweird.f32 %v1145
        %vm1187 = vweird.f32 %v1181
        %vm1188 = vmor %vm1186, %vm1187
        %v1189 = vsel %vm1188, %v1181, %v1185
        %v1190 = vand.u32 2147483647, %v1145
        %vm1191 = vcmp.eq.f32.partialorder %v1190, 8.507059e+37
        %v1192 = vand.u32 %v1145, 2147483648
        %v1193 = vor.u32 1.1754944e-38, %v1192
        %v1194 = vsel %vm1191, %v1193, %v1189
        %v1195 = vmul.f32 1.0, %v1194
        %v1196 = vrcp.pop %v1146
        %v1197 = vmul.f32 %v1146, %v1196
        %v1198 = vsub.f32 1.0, %v1197
        %v1199 = vmul.f32 %v1196, %v1198
        %v1200 = vadd.f32 %v1196, %v1199
        %vm1201 = vweird.f32 %v1146
        %vm1202 = vweird.f32 %v1196
        %vm1203 = vmor %vm1201, %vm1202
        %v1204 = vsel %vm1203, %v1196, %v1200
        %v1205 = vand.u32 2147483647, %v1146
        %vm1206 = vcmp.eq.f32.partialorder %v1205, 8.507059e+37
        %v1207 = vand.u32 %v1146, 2147483648
        %v1208 = vor.u32 1.1754944e-38, %v1207
        %v1209 = vsel %vm1206, %v1208, %v1204
        %v1210 = vmul.f32 1.0, %v1209
        %v1211 = vrcp.pop %v1147
        %v1212 = vmul.f32 %v1147, %v1211
        %v1213 = vsub.f32 1.0, %v1212
        %v1214 = vmul.f32 %v1211, %v1213
        %v1215 = vadd.f32 %v1211, %v1214
        %vm1216 = vweird.f32 %v1147
        %vm1217 = vweird.f32 %v1211
        %vm1218 = vmor %vm1216, %vm1217
        %v1219 = vsel %vm1218, %v1211, %v1215
        %v1220 = vand.u32 2147483647, %v1147
        %vm1221 = vcmp.eq.f32.partialorder %v1220, 8.507059e+37
        %v1222 = vand.u32 %v1147, 2147483648
        %v1223 = vor.u32 1.1754944e-38, %v1222
        %v1224 = vsel %vm1221, %v1223, %v1219
        %v1225 = vmul.f32 1.0, %v1224
        %v1226 = vrcp.pop %v1148
        %v1227 = vmul.f32 %v1148, %v1226
        %v1228 = vsub.f32 1.0, %v1227
        %v1229 = vmul.f32 %v1226, %v1228
        %v1230 = vadd.f32 %v1226, %v1229
        %vm1231 = vweird.f32 %v1148
        %vm1232 = vweird.f32 %v1226
        %vm1233 = vmor %vm1231, %vm1232
        %v1234 = vsel %vm1233, %v1226, %v1230
        %v1235 = vand.u32 2147483647, %v1148
        %vm1236 = vcmp.eq.f32.partialorder %v1235, 8.507059e+37
        %v1237 = vand.u32 %v1148, 2147483648
        %v1238 = vor.u32 1.1754944e-38, %v1237
        %v1239 = vsel %vm1236, %v1238, %v1234
        %v1240 = vmul.f32 1.0, %v1239
        %v1241 = vrcp.pop %v1149
        %v1242 = vmul.f32 %v1149, %v1241
        %v1243 = vsub.f32 1.0, %v1242
        %v1244 = vmul.f32 %v1241, %v1243
        %v1245 = vadd.f32 %v1241, %v1244
        %vm1246 = vweird.f32 %v1149
        %vm1247 = vweird.f32 %v1241
        %vm1248 = vmor %vm1246, %vm1247
        %v1249 = vsel %vm1248, %v1241, %v1245
        %v1250 = vand.u32 2147483647, %v1149
        %vm1251 = vcmp.eq.f32.partialorder %v1250, 8.507059e+37
        %v1252 = vand.u32 %v1149, 2147483648
        %v1253 = vor.u32 1.1754944e-38, %v1252
        %v1254 = vsel %vm1251, %v1253, %v1249
        %v1255 = vmul.f32 1.0, %v1254
        %v1256 = vrcp.pop %v1150
        %v1257 = vmul.f32 %v1150, %v1256
        %v1258 = vsub.f32 1.0, %v1257
        %v1259 = vmul.f32 %v1256, %v1258
        %v1260 = vadd.f32 %v1256, %v1259
        %vm1261 = vweird.f32 %v1150
        %vm1262 = vweird.f32 %v1256
        %vm1263 = vmor %vm1261, %vm1262
        %v1264 = vsel %vm1263, %v1256, %v1260
        %v1265 = vand.u32 2147483647, %v1150
        %vm1266 = vcmp.eq.f32.partialorder %v1265, 8.507059e+37
        %v1267 = vand.u32 %v1150, 2147483648
        %v1268 = vor.u32 1.1754944e-38, %v1267
        %v1269 = vsel %vm1266, %v1268, %v1264
        %v1270 = vmul.f32 1.0, %v1269
        %v1279 = vrot.slane %v1180, 6
        %v1280 = vrot.slane %v1195, 4
        %v1281 = vrot.slane %v1210, 2
        %v1282 = vrot.slane %v1240, 6
        %v1283 = vrot.slane %v1255, 4
        %v1284 = vrot.slane %v1270, 2
        %vm1285 = vcmask 1041408
        %v1286 = vsel %vm1285, %v1165, %v1279
        %vm1287 = vcmask 1045508
        %v1288 = vsel %vm1287, %v1280, %v1281
        %v1289 = vsel %vm363, %v1286, %v1288
        %v1290 = vsel %vm1285, %v1225, %v1282
        %v1291 = vsel %vm1287, %v1283, %v1284
        %v1292 = vsel %vm363, %v1290, %v1291
        %1295 = vst [vmem:[%s296] sm:$0xff] %v1289
        %1296 = vst [vmem:[%s296 + $0x8] sm:$0xff] %v1292
        %s1297 = sand.u32 %s184, 1
        %s1298 = scalar_lea.sflag [#allocation4], %s1297
        %s1299 = sand.u32 %s184, 1
        %s1300 = smul.addr %s1299, 16
        %s1301 = scalar_lea.vmem [#allocation5], %s1300
        // Predicated region
        $region53: #{tpu_custom_call.1} parent=47 // pred_check
          %p1302 = pneg %p194
        $region54: #{tpu_custom_call.1} parent=47 // pred_check_branch
          %1304 = sbr.rel (%p1302) target = $region56
        $region55: #{tpu_custom_call.1} parent=47 // pred_region
          %s1305 = smul.u32 8, %s24
          %1307 = vsyncadd %s1298, 0
          %s1308 = smul.addr %s1305, 2
          %s1309 = scalar_lea.hbm %s7, %s1308
          %s1311 = sshll.u32 %s1301, 4
          %s1312 = int_to_ptr.vmem [resolvable:$true] %s1311
          %s1313 = sshll.u32 %s1309, 4
          %s1314 = int_to_ptr.hbm [resolvable:$true] %s1313
          %1316 = dma.vmem_to_hbm [thread:$0]  %s1312, 256, %s1314, %s1298
        $region56: #{tpu_custom_call.1} parent=47 // pred_fallthru
          _
      $region48: #{tpu_custom_call.1} parent=5 // pred_fallthru
        _
      %p1317 = scmp.le.s32.totalorder 2, %s19
      // Predicated region
      $region57: #{tpu_custom_call.1} parent=5 // pred_check
        %p1318 = pneg %p1317
      $region58: #{tpu_custom_call.1} parent=5 // pred_check_branch
        %1320 = sbr.rel (%p1318) target = $region60
      $region59: #{tpu_custom_call.1} parent=5 // pred_region
        %s1321 = ssub.s32 %s19, 2
        // Predicated region
        $region61: #{tpu_custom_call.1} parent=59 // pred_check
          %p1322 = pneg %p200
        $region62: #{tpu_custom_call.1} parent=59 // pred_check_branch
          %1324 = sbr.rel (%p1322) target = $region64
        $region63: #{tpu_custom_call.1} parent=59 // pred_region
          %s1325 = sand.u32 %s185, 1
          %s1326 = scalar_lea.sflag [#allocation4], %s1325
          %s1327 = sand.u32 %s185, 1
          %s1328 = smul.addr %s1327, 16
          %s1329 = scalar_lea.vmem [#allocation5], %s1328
          %1331 = dma.done %s1326, 256
        $region64: #{tpu_custom_call.1} parent=59 // pred_fallthru
          _
      $region60: #{tpu_custom_call.1} parent=5 // pred_fallthru
        _
    $region6: #{tpu_custom_call.1} parent=1 // loop_footer
      %s23 = sadd.s32 1, %s19
    $region7: #{tpu_custom_call.1} parent=1 // loop_footer_branch
      %18 = sbr.rel target = $region3
    $region8: #{tpu_custom_call.1} parent=1 // loop_exit
      _
    %1332 = vsyncpa [#allocation3], 1
    %s1333 = scalar_lea.sflag [#allocation3], 1
    %1334 = vsyncpa %s1333, 1
    %1335 = vsyncpa [#allocation4], 1
    %s1336 = scalar_lea.sflag [#allocation4], 1
    %1337 = vsyncpa %s1336, 1

</llo_original>
